<compile_context>
chip_gen: v5e
topology: v5e:2x2
jax: 0.10.0
libtpu: 0.0.40
codegen_flags: <defaults>
</compile_context>

<pallas_src>
import jax
import jax.numpy as jnp
from jax.experimental import pallas as pl
from jax.experimental.pallas import tpu as pltpu


def _round_up(n, m):
    return ((n + m - 1) // m) * m


def _auxnet_single_k_kernel(x_ref, w_ref, b_ref, o_ref):
    """K fits in one tile: out = x @ W + b, no scratch accumulator."""
    acc = jnp.dot(x_ref[...], w_ref[...], preferred_element_type=jnp.float32)
    o_ref[...] = (acc + b_ref[...].astype(jnp.float32)).astype(o_ref.dtype)


def _auxnet_multi_k_kernel(x_ref, w_ref, b_ref, o_ref, acc_ref):
    """General tiled GEMM: accumulate over K, bias-add + store on last k."""
    k = pl.program_id(2)

    @pl.when(k == 0)
    def _():
        acc_ref[...] = jnp.zeros_like(acc_ref)

    acc_ref[...] += jnp.dot(
        x_ref[...], w_ref[...], preferred_element_type=jnp.float32
    )

    @pl.when(k == pl.num_programs(2) - 1)
    def _():
        o_ref[...] = (
            acc_ref[...] + b_ref[...].astype(jnp.float32)
        ).astype(o_ref.dtype)


def auxnet_forward(x, w_fc, b_fc, w_aux, b_aux):
    """x: [B, D]; w_fc: [D, O]; b_fc: [1, O]; w_aux: [D, A]; b_aux: [1, A].

    Returns (y [B, O], aux [B, A]) from a single fused, lane-dense GEMM.
    """
    B, D = x.shape
    O = w_fc.shape[1]
    A = w_aux.shape[1]
    N = O + A
    dt = x.dtype

    # Tile sizes: sublane-aligned M tile, 128-lane-aligned N/K tiles.
    tm = min(256, _round_up(B, 8))
    tn = min(512, _round_up(N, 128))
    tk = min(512, _round_up(D, 128))

    M_pad = _round_up(B, tm)
    N_pad = _round_up(N, tn)
    K_pad = _round_up(D, tk)

    # Fuse the two heads; zero-pad only when needed (zeros along K contribute
    # nothing; padded M/N rows/cols are sliced off below).  Output stays
    # lane-dense (N_pad % 128 == 0).
    if (M_pad, K_pad) == (B, D):
        x_p = x
    else:
        x_p = jnp.zeros((M_pad, K_pad), dt).at[:B, :D].set(x)

    w_cat = jnp.concatenate([w_fc, w_aux], axis=1).astype(dt)
    b_cat = jnp.concatenate([b_fc, b_aux], axis=1).astype(dt)
    if (K_pad, N_pad) == (D, N):
        w_p = w_cat
        b_p = b_cat
    else:
        w_p = jnp.zeros((K_pad, N_pad), dt).at[:D, :N].set(w_cat)
        b_p = jnp.zeros((1, N_pad), dt).at[:, :N].set(b_cat)

    gm, gn, gk = M_pad // tm, N_pad // tn, K_pad // tk

    if gk == 1:
        # Fast path: no reduction axis in the grid, no scratch accumulator.
        out = pl.pallas_call(
            _auxnet_single_k_kernel,
            out_shape=jax.ShapeDtypeStruct((M_pad, N_pad), dt),
            grid_spec=pltpu.PrefetchScalarGridSpec(
                num_scalar_prefetch=0,
                grid=(gm, gn),
                in_specs=[
                    pl.BlockSpec((tm, tk), lambda i, j: (i, 0)),   # x
                    pl.BlockSpec((tk, tn), lambda i, j: (0, j)),   # fused W
                    pl.BlockSpec((1, tn), lambda i, j: (0, j)),    # fused bias
                ],
                out_specs=pl.BlockSpec((tm, tn), lambda i, j: (i, j)),
            ),
            compiler_params=pltpu.CompilerParams(
                dimension_semantics=("parallel", "parallel"),
            ),
        )(x_p, w_p, b_p)
    else:
        out = pl.pallas_call(
            _auxnet_multi_k_kernel,
            out_shape=jax.ShapeDtypeStruct((M_pad, N_pad), dt),
            grid_spec=pltpu.PrefetchScalarGridSpec(
                num_scalar_prefetch=0,
                grid=(gm, gn, gk),
                in_specs=[
                    pl.BlockSpec((tm, tk), lambda i, j, k: (i, k)),   # x
                    pl.BlockSpec((tk, tn), lambda i, j, k: (k, j)),   # fused W
                    pl.BlockSpec((1, tn), lambda i, j, k: (0, j)),    # fused bias
                ],
                out_specs=pl.BlockSpec((tm, tn), lambda i, j, k: (i, j)),
                scratch_shapes=[pltpu.VMEM((tm, tn), jnp.float32)],
            ),
            compiler_params=pltpu.CompilerParams(
                dimension_semantics=("parallel", "parallel", "arbitrary"),
            ),
        )(x_p, w_p, b_p)

    y = out[:B, :O]
    aux = out[:B, O:N]
    return y, aux


def init_params(key, input_dim, output, aux_output, dtype=jnp.float32):
    """Deterministic init mimicking torch.nn.Linear (uniform +/- 1/sqrt(fan_in))."""
    k1, k2, k3, k4 = jax.random.split(key, 4)
    bound = 1.0 / (input_dim ** 0.5)
    # Stored pre-transposed: [input_dim, out_features]
    w_fc = jax.random.uniform(k1, (input_dim, output), dtype, -bound, bound)
    b_fc = jax.random.uniform(k2, (1, output), dtype, -bound, bound)
    w_aux = jax.random.uniform(k3, (input_dim, aux_output), dtype, -bound, bound)
    b_aux = jax.random.uniform(k4, (1, aux_output), dtype, -bound, bound)
    return w_fc, b_fc, w_aux, b_aux


if __name__ == "__main__":
    # Small shapes consistent with the module: batch=8, input_dim=32,
    # output=16, aux_output=8.
    B, D, O, A = 8, 32, 16, 8

    key = jax.random.PRNGKey(0)
    kx, kp = jax.random.split(key)
    x = jax.random.normal(kx, (B, D), jnp.float32)
    w_fc, b_fc, w_aux, b_aux = init_params(kp, D, O, A)

    y, aux = jax.jit(auxnet_forward)(x, w_fc, b_fc, w_aux, b_aux)
    jax.block_until_ready((y, aux))

    # Pure-JAX reference check.
    y_ref = x @ w_fc + b_fc
    aux_ref = x @ w_aux + b_aux
    assert y.shape == (B, O) and aux.shape == (B, A)
    assert jnp.allclose(y, y_ref, atol=1e-5, rtol=1e-5)
    assert jnp.allclose(aux, aux_ref, atol=1e-5, rtol=1e-5)

    print("KERNEL_OK")
</pallas_src>

<mosaic_0001>
module attributes {stable_mosaic.version = 11 : i64} {
  func.func @_auxnet_single_k_kernel(%arg0: i32, %arg1: i32, %arg2: memref<8x128xf32, #tpu.memory_space<vmem>>, %arg3: memref<128x128xf32, #tpu.memory_space<vmem>>, %arg4: memref<1x128xf32, #tpu.memory_space<vmem>>, %arg5: memref<8x128xf32, #tpu.memory_space<vmem>>) attributes {dimension_semantics = [#tpu.dimension_semantics<parallel>, #tpu.dimension_semantics<parallel>], iteration_bounds = array<i64: 1, 1>, scalar_prefetch = 0 : i64, scratch_operands = 0 : i64, tpu.core_type = #tpu.core_type<tc>, window_params = [{transform_indices = @transform_0, window_bounds = array<i64: 8, 128>}, {transform_indices = @transform_1, window_bounds = array<i64: 128, 128>}, {transform_indices = @transform_2, window_bounds = array<i64: 1, 128>}, {transform_indices = @transform_3, window_bounds = array<i64: 8, 128>}]} {
    %c0 = arith.constant 0 : index
    %c0_0 = arith.constant 0 : index
    %0 = vector.load %arg2[%c0, %c0_0] : memref<8x128xf32, #tpu.memory_space<vmem>>, vector<8x128xf32>
    %c0_1 = arith.constant 0 : index
    %c0_2 = arith.constant 0 : index
    %1 = vector.load %arg3[%c0_1, %c0_2] : memref<128x128xf32, #tpu.memory_space<vmem>>, vector<128x128xf32>
    %cst = arith.constant dense<0.000000e+00> : vector<8x128xf32>
    %2 = tpu.matmul %0, %1, %cst {dimension_numbers = #tpu.dot_dimension_numbers<[1], [0], [0], [1], [0, 0, 1, 1], [], []>} : vector<8x128xf32>, vector<128x128xf32>, vector<8x128xf32> -> vector<8x128xf32>
    %c0_3 = arith.constant 0 : index
    %c0_4 = arith.constant 0 : index
    %3 = vector.load %arg4[%c0_3, %c0_4] : memref<1x128xf32, #tpu.memory_space<vmem>>, vector<1x128xf32>
    %4 = vector.broadcast %3 : vector<1x128xf32> to vector<8x128xf32>
    %5 = arith.addf %2, %4 : vector<8x128xf32>
    %c0_5 = arith.constant 0 : index
    %c0_6 = arith.constant 0 : index
    %6 = vector.load %arg5[%c0_5, %c0_6] : memref<8x128xf32, #tpu.memory_space<vmem>>, vector<8x128xf32>
    tpu.vector_store %arg5[%c0_5, %c0_6], %5 {strides = array<i32>} : memref<8x128xf32, #tpu.memory_space<vmem>>, vector<8x128xf32>,
    return
  }
  func.func @transform_0(%arg0: i32, %arg1: i32) -> (i32, i32) {
    %c0_i32 = arith.constant 0 : i32
    %c0_i32_0 = arith.constant 0 : i32
    return %arg0, %c0_i32 : i32, i32
  }
  func.func @transform_1(%arg0: i32, %arg1: i32) -> (i32, i32) {
    %c0_i32 = arith.constant 0 : i32
    %c0_i32_0 = arith.constant 0 : i32
    return %c0_i32, %arg1 : i32, i32
  }
  func.func @transform_2(%arg0: i32, %arg1: i32) -> (i32, i32) {
    %c0_i32 = arith.constant 0 : i32
    %c0_i32_0 = arith.constant 0 : i32
    return %c0_i32, %arg1 : i32, i32
  }
  func.func @transform_3(%arg0: i32, %arg1: i32) -> (i32, i32) {
    %c0_i32 = arith.constant 0 : i32
    return %arg0, %arg1 : i32, i32
  }
}

</mosaic_0001>

<llo_original>
// kernel: auxnet_forward.1
$region0: #{auxnet_forward.1}
  #allocation0 [shape = 'u32[]', space=smem, size = 0x4, offset = 0x4, fixed_abs, tag = 'smem constant byte address 0x4 - core index']
  #allocation1 [shape = 'u32[72,128]{1,0:T(1,128)}', space=vmem, size = 0x9000, scoped, tag = 'internal scratch']
  %s0 = inlined_call_operand.vmem [shape: f32[8,128], index: 0, kind: input, shape index: {}]
  %s1 = inlined_call_operand.vmem [shape: f32[128,128], index: 1, kind: input, shape index: {}]
  %s2 = inlined_call_operand.vmem [shape: f32[1,128], index: 2, kind: input, shape index: {}]
  %s3 = inlined_call_operand.vmem [shape: f32[8,128], index: 3, kind: output, shape index: {}]
  %s4 = sld [smem:[#allocation0]]
  $region22: #{auxnet_forward.1} parent=0
    _
  %s6 = ssub.s32 1, %s4
  %s7 = scalar_select 0, %s6, %s4
  // Predicated region
  $region2: #{auxnet_forward.1} parent=0 // pred_check
    _
  $region3: #{auxnet_forward.1} parent=0 // pred_check_branch
    %9 = sbr.rel (0) target = $region5
  $region4: #{auxnet_forward.1} parent=0 // pred_region
    _
  $region5: #{auxnet_forward.1} parent=0 // pred_fallthru
    _
  // Predicated region
  $region6: #{auxnet_forward.1} parent=0 // pred_check
    _
  $region7: #{auxnet_forward.1} parent=0 // pred_check_branch
    %11 = sbr.rel (0) target = $region9
  $region8: #{auxnet_forward.1} parent=0 // pred_region
    _
  $region9: #{auxnet_forward.1} parent=0 // pred_fallthru
    _
  // Predicated region
  $region10: #{auxnet_forward.1} parent=0 // pred_check
    _
  $region11: #{auxnet_forward.1} parent=0 // pred_check_branch
    %13 = sbr.rel (0) target = $region13
  $region12: #{auxnet_forward.1} parent=0 // pred_region
    _
  $region13: #{auxnet_forward.1} parent=0 // pred_fallthru
    _
  %v14 = vld [vmem:[%s0] sm:$0xff]
  %v15 = vld [vmem:[%s1] sm:$0xff]
  %v16 = vld [vmem:[%s1 + $0x8] sm:$0xff]
  %v17 = vld [vmem:[%s1 + $0x10] sm:$0xff]
  %v18 = vld [vmem:[%s1 + $0x18] sm:$0xff]
  %v19 = vld [vmem:[%s1 + $0x20] sm:$0xff]
  %v20 = vld [vmem:[%s1 + $0x28] sm:$0xff]
  %v21 = vld [vmem:[%s1 + $0x30] sm:$0xff]
  %v22 = vld [vmem:[%s1 + $0x38] sm:$0xff]
  %v23 = vld [vmem:[%s1 + $0x40] sm:$0xff]
  %v24 = vld [vmem:[%s1 + $0x48] sm:$0xff]
  %v25 = vld [vmem:[%s1 + $0x50] sm:$0xff]
  %v26 = vld [vmem:[%s1 + $0x58] sm:$0xff]
  %v27 = vld [vmem:[%s1 + $0x60] sm:$0xff]
  %v28 = vld [vmem:[%s1 + $0x68] sm:$0xff]
  %v29 = vld [vmem:[%s1 + $0x70] sm:$0xff]
  %v30 = vld [vmem:[%s1 + $0x78] sm:$0xff]
  %v31 = vld [vmem:[%s2] sm:$0x1]
  %v33 = vperm.slane %v31, 0
  %35 = vmatpush.msra.mxu0 %v30
  %36 = vmatpush.msra.mxu0 %v29
  %37 = vmatpush.msra.mxu0 %v28
  %38 = vmatpush.msra.mxu0 %v27
  %39 = vmatpush.msra.mxu0 %v26
  %40 = vmatpush.msra.mxu0 %v25
  %41 = vmatpush.msra.mxu0 %v24
  %42 = vmatpush.msra.mxu0 %v23
  %43 = vmatpush.msra.mxu0 %v22
  %44 = vmatpush.msra.mxu0 %v21
  %45 = vmatpush.msra.mxu0 %v20
  %46 = vmatpush.msra.mxu0 %v19
  %47 = vmatpush.msra.mxu0 %v18
  %48 = vmatpush.msra.mxu0 %v17
  %49 = vmatpush.msra.mxu0 %v16
  %50 = vmatpush.msra.mxu0 %v15
  %51 = vmatmul.f32.gmra.mxu0 %v14
  %v52 = vpop.f32.mrf.mxu0
  %v53 = vadd.f32 %v33, %v52
  %54 = vdwg.mxu0
  %55 = vst [vmem:[%s3] sm:$0xff] %v53
  // Predicated region
  $region14: #{auxnet_forward.1} parent=0 // pred_check
    _
  $region15: #{auxnet_forward.1} parent=0 // pred_check_branch
    %57 = sbr.rel (0) target = $region17
  $region16: #{auxnet_forward.1} parent=0 // pred_region
    _
  $region17: #{auxnet_forward.1} parent=0 // pred_fallthru
    _
  // Predicated region
  $region18: #{auxnet_forward.1} parent=0 // pred_check
    _
  $region19: #{auxnet_forward.1} parent=0 // pred_check_branch
    %59 = sbr.rel (0) target = $region21
  $region20: #{auxnet_forward.1} parent=0 // pred_region
    _
  $region21: #{auxnet_forward.1} parent=0 // pred_fallthru
    _

</llo_original>
